<compile_context>
chip_gen: v7x
topology: tpu7x:2x2x1
jax: 0.10.0
libtpu: 0.0.40
codegen_flags: <defaults>
</compile_context>

<pallas_src>
import functools

import jax
import jax.numpy as jnp
from jax import lax
from jax.experimental import pallas as pl
from jax.experimental.pallas import tpu as pltpu


@functools.cache
def _roll_matches_numpy_for(platform: str) -> bool:
    """Probe pltpu.roll's sign convention once per backend."""
    del platform  # cache key only

    def probe(x_ref, o_ref):
        o_ref[...] = pltpu.roll(x_ref[...], 1, axis=1)

    x = jnp.tile(lax.iota(jnp.float32, 128)[None, :], (8, 1))
    y = pl.pallas_call(probe,
                       out_shape=jax.ShapeDtypeStruct((8, 128), jnp.float32))(x)
    return bool(y[0, 0] == 127.0)  # np.roll convention: result[0] == x[-1]


def _roll_matches_numpy() -> bool:
    return _roll_matches_numpy_for(jax.default_backend())


def _vmem_limit_bytes() -> int:
    """Generation-aware VMEM budget: exploit 128 MiB parts, leave headroom on v7x."""
    try:
        kind = jax.devices()[0].device_kind.lower()
    except Exception:  # pragma: no cover - defensive
        kind = ""
    if ("v4" in kind) or ("v5" in kind) or ("v6" in kind):
        return 100 * 1024 * 1024          # 128 MiB physical VMEM
    return 48 * 1024 * 1024               # v7x (64 MiB physical) / unknown: headroom


def _bottleneck_kernel(x_ref, w1_ref, b1_ref, w2_ref, b2_ref, w3_ref, b3_ref,
                       o_ref, *, H, W, roll_like_np):
    HW = H * W

    # Pixel coordinates along the lane (pixel) axis -- shared by all images/taps.
    col = lax.broadcasted_iota(jnp.int32, (1, HW), 1)
    py = col // W
    px = col % W

    # Precompute per-tap lane shift + border mask (mask is None for the center tap).
    # Tap (ky, kx): out(y, x) += w2[ky, kx] @ in(y + ky - 1, x + kx - 1); the lane
    # roll wraps exactly the out-of-image pixels, which the mask zeroes (== the
    # conv's zero padding).
    taps = []
    for ky in range(3):
        for kx in range(3):
            s = (ky - 1) * W + (kx - 1)
            shift = (-s if roll_like_np else s) % HW
            if ky == 1 and kx == 1:
                taps.append((shift, None))
            else:
                sy = py + (ky - 1)
                sx = px + (kx - 1)
                valid = (sy >= 0) & (sy < H) & (sx >= 0) & (sx < W)
                taps.append((shift, valid))

    w1 = w1_ref[...]            # (P, Cin)   bf16, BN folded
    w2 = w2_ref[...]            # (P, 9*P)   bf16, BN folded, tap-packed
    w3 = w3_ref[...]            # (Cin, P)   bf16, BN folded
    b1 = b1_ref[...]            # (P, 1)     f32
    b2 = b2_ref[...]            # (P, 1)     f32
    b3 = b3_ref[...]            # (Cin, 1)   f32

    for b in range(x_ref.shape[0]):                     # images per grid step (static)
        x_f32 = x_ref[b]                                # (Cin, HW) f32
        x_bf = x_f32.astype(jnp.bfloat16)

        # ---- conv1 (1x1, BN folded) + bias + ReLU --------------------------
        h1 = jnp.dot(w1, x_bf, preferred_element_type=jnp.float32)     # (P, HW)
        h1 = jnp.maximum(h1 + b1, 0.0)

        # ---- conv2 (3x3, stride 1, pad 1, BN folded) + bias + ReLU ---------
        # Stack the 9 shifted+masked copies along the contraction axis and do a
        # single K = 9*P matmul (accumulation inside the MXU, no VMEM acc).
        patches = []
        for shift, valid in taps:
            p = pltpu.roll(h1, shift, axis=1) if shift else h1
            if valid is not None:
                p = jnp.where(valid, p, 0.0)
            patches.append(p)
        stacked = jnp.concatenate(patches, axis=0).astype(jnp.bfloat16)  # (9P, HW)

        h2 = jnp.dot(w2, stacked, preferred_element_type=jnp.float32)   # (P, HW)
        h2 = jnp.maximum(h2 + b2, 0.0).astype(jnp.bfloat16)

        # ---- conv3 (1x1, BN folded) + bias + residual (f32) + ReLU ---------
        h3 = jnp.dot(w3, h2, preferred_element_type=jnp.float32)        # (Cin, HW)
        h3 = h3 + b3 + x_f32
        o_ref[b] = jnp.maximum(h3, 0.0).astype(o_ref.dtype)


def fold_params(params):
    """Fold eval-mode BN affine into conv weights; emit channel-major kernel params.

    w2 is packed as (Cout, 9*Cin) with column block k = ky*3+kx holding
    w2[ky, kx, :, :].T so conv2 becomes a single K = 9*Cin matmul in-kernel.
    """
    Cin, P = params["w1"].shape
    w1 = (params["w1"] * params["s1"]).T                          # (P, Cin)
    w2 = params["w2"] * params["s2"].reshape(1, 1, 1, P)          # (3,3,Cin,Cout) HWIO
    w2 = jnp.transpose(w2, (0, 1, 3, 2)).reshape(9, P, P)         # (tap, Cout, Cin)
    w2 = jnp.transpose(w2, (1, 0, 2)).reshape(P, 9 * P)           # (Cout, tap*Cin)
    w3 = (params["w3"] * params["s3"]).T                          # (Cin, P)
    return dict(
        w1=w1.astype(jnp.bfloat16),
        b1=params["b1"].reshape(P, 1).astype(jnp.float32),
        w2=w2.astype(jnp.bfloat16),
        b2=params["b2"].reshape(P, 1).astype(jnp.float32),
        w3=w3.astype(jnp.bfloat16),
        b3=params["b3"].reshape(Cin, 1).astype(jnp.float32),
    )


def bottleneck_forward(x_nchw, kparams, *, images_per_step=1, out_dtype=jnp.float32):
    """Hot path: f32 NCHW in, no wrapper-side dtype/transpose passes (reshape only)."""
    assert x_nchw.ndim == 4, "expected NCHW input"
    N, Cin, H, W = x_nchw.shape
    HW = H * W
    P = kparams["w1"].shape[0]
    assert kparams["w1"].shape == (P, Cin), "w1 does not match input channels"
    assert kparams["w2"].shape == (P, 9 * P), "w2 must be tap-packed (P, 9P)"
    assert kparams["w3"].shape == (Cin, P), "w3 does not match input channels"
    assert N % images_per_step == 0, "images_per_step must divide the batch"
    # stride must be 1: the residual add requires matching spatial dims.
    # TODO(synk): stride != 1 / projection shortcut and training-mode BN unimplemented.

    x = x_nchw.reshape(N, Cin, HW)          # contiguous reshape; f32 goes straight in
    NB = images_per_step

    kernel = functools.partial(_bottleneck_kernel, H=H, W=W,
                               roll_like_np=_roll_matches_numpy())

    out = pl.pallas_call(
        kernel,
        out_shape=jax.ShapeDtypeStruct((N, Cin, HW), out_dtype),
        grid_spec=pltpu.PrefetchScalarGridSpec(
            num_scalar_prefetch=0,
            grid=(N // NB,),                                   # images per grid step
            in_specs=[
                pl.BlockSpec((NB, Cin, HW), lambda n: (n, 0, 0)),   # x (f32)
                pl.BlockSpec((P, Cin), lambda n: (0, 0)),           # w1
                pl.BlockSpec((P, 1), lambda n: (0, 0)),             # b1
                pl.BlockSpec((P, 9 * P), lambda n: (0, 0)),         # w2 (tap-packed)
                pl.BlockSpec((P, 1), lambda n: (0, 0)),             # b2
                pl.BlockSpec((Cin, P), lambda n: (0, 0)),           # w3
                pl.BlockSpec((Cin, 1), lambda n: (0, 0)),           # b3
            ],
            out_specs=pl.BlockSpec((NB, Cin, HW), lambda n: (n, 0, 0)),
        ),
        compiler_params=pltpu.CompilerParams(
            dimension_semantics=("parallel",),        # batch axis: megacore-shardable
            vmem_limit_bytes=_vmem_limit_bytes(),
        ),
    )(x, kparams["w1"], kparams["b1"], kparams["w2"], kparams["b2"],
      kparams["w3"], kparams["b3"])

    return out.reshape(N, Cin, H, W)


# ------------------------------ references ----------------------------------
def bottleneck_ref_matched(x_nchw, params):
    """Pure-JAX reference reproducing the kernel's numerics (folded BN, bf16 matmul
    operands, f32 accumulation, f32 residual)."""
    x32 = jnp.transpose(x_nchw, (0, 2, 3, 1)).astype(jnp.float32)     # NHWC f32
    xb = x32.astype(jnp.bfloat16)
    w1 = (params["w1"] * params["s1"]).astype(jnp.bfloat16)
    w2 = (params["w2"] * params["s2"].reshape(1, 1, 1, -1)).astype(jnp.bfloat16)
    w3 = (params["w3"] * params["s3"]).astype(jnp.bfloat16)

    h = jnp.einsum("nhwc,cp->nhwp", xb, w1, preferred_element_type=jnp.float32)
    h = jnp.maximum(h + params["b1"], 0.0).astype(jnp.bfloat16)
    h = lax.conv_general_dilated(h, w2, (1, 1), "SAME",
                                 dimension_numbers=("NHWC", "HWIO", "NHWC"),
                                 preferred_element_type=jnp.float32)
    h = jnp.maximum(h + params["b2"], 0.0).astype(jnp.bfloat16)
    h = jnp.einsum("nhwp,pc->nhwc", h, w3, preferred_element_type=jnp.float32)
    h = h + params["b3"] + x32
    return jnp.transpose(jnp.maximum(h, 0.0), (0, 3, 1, 2))


def bottleneck_ref_f32(x_nchw, params):
    """Pure-f32 reference matching the original module math (eval-mode BN)."""
    hp = lax.Precision.HIGHEST
    x = jnp.transpose(x_nchw, (0, 2, 3, 1)).astype(jnp.float32)
    h = jnp.einsum("nhwc,cp->nhwp", x, params["w1"], precision=hp)
    h = jax.nn.relu(h * params["s1"] + params["b1"])
    h = lax.conv_general_dilated(h, params["w2"], (1, 1), "SAME",
                                 dimension_numbers=("NHWC", "HWIO", "NHWC"),
                                 precision=hp)
    h = jax.nn.relu(h * params["s2"] + params["b2"])
    h = jnp.einsum("nhwp,pc->nhwc", h, params["w3"], precision=hp)
    h = h * params["s3"] + params["b3"]
    return jnp.transpose(jax.nn.relu(h + x), (0, 3, 1, 2))


def init_params(key, inplanes, planes):
    ks = jax.random.split(key, 15)

    def bn_fold(kg, kb, km, kv, c):
        gamma = 1.0 + 0.1 * jax.random.normal(kg, (c,))
        beta = 0.1 * jax.random.normal(kb, (c,))
        mean = 0.1 * jax.random.normal(km, (c,))
        var = jax.random.uniform(kv, (c,), minval=0.5, maxval=1.5)
        scale = gamma / jnp.sqrt(var + 1e-5)
        bias = beta - mean * scale
        return (scale.reshape(1, c).astype(jnp.float32),
                bias.reshape(1, c).astype(jnp.float32))

    w1 = (0.2 * jax.random.normal(ks[0], (inplanes, planes))).astype(jnp.float32)
    w2 = (0.1 * jax.random.normal(ks[1], (3, 3, planes, planes))).astype(jnp.float32)
    w3 = (0.2 * jax.random.normal(ks[2], (planes, inplanes))).astype(jnp.float32)
    s1, b1 = bn_fold(ks[3], ks[4], ks[5], ks[6], planes)
    s2, b2 = bn_fold(ks[7], ks[8], ks[9], ks[10], planes)
    s3, b3 = bn_fold(ks[11], ks[12], ks[13], ks[14], inplanes)
    return dict(w1=w1, w2=w2, w3=w3, s1=s1, b1=b1, s2=s2, b2=b2, s3=s3, b3=b3)


if __name__ == "__main__":
    inplanes, planes = 4, 8
    N, H, W = 2, 16, 16

    key = jax.random.PRNGKey(0)
    k_x, k_p = jax.random.split(key)
    x = jax.random.normal(k_x, (N, inplanes, H, W), dtype=jnp.float32)   # NCHW f32
    params = init_params(k_p, inplanes, planes)

    kparams = fold_params(params)                   # one-time host-side BN fold / pack
    out = jax.block_until_ready(bottleneck_forward(x, kparams))

    ref_bf16 = jax.block_until_ready(bottleneck_ref_matched(x, params))
    ref_f32 = jax.block_until_ready(bottleneck_ref_f32(x, params))

    assert out.shape == x.shape == ref_bf16.shape
    assert jnp.allclose(out, ref_bf16, rtol=2e-3, atol=2e-3), \
        f"matched-precision max abs err = {jnp.max(jnp.abs(out - ref_bf16))}"
    assert jnp.allclose(out, ref_f32, rtol=5e-2, atol=1e-1), \
        f"f32-reference max abs err = {jnp.max(jnp.abs(out - ref_f32))}"

    print("KERNEL_OK")
</pallas_src>

<mosaic_0001>
module attributes {stable_mosaic.version = 11 : i64} {
  func.func @probe(%arg0: memref<8x128xf32, #tpu.memory_space<vmem>>, %arg1: memref<8x128xf32, #tpu.memory_space<vmem>>) attributes {dimension_semantics = [], scalar_prefetch = 0 : i64, scratch_operands = 0 : i64, tpu.core_type = #tpu.core_type<tc>} {
    %c0 = arith.constant 0 : index
    %c0_0 = arith.constant 0 : index
    %0 = vector.load %arg0[%c0, %c0_0] : memref<8x128xf32, #tpu.memory_space<vmem>>, vector<8x128xf32>
    %c1_i32 = arith.constant 1 : i32
    %1 = tpu.dynamic_rotate %0 by %c1_i32 dim 1 : vector<8x128xf32>, i32 -> vector<8x128xf32>
    %c0_1 = arith.constant 0 : index
    %c0_2 = arith.constant 0 : index
    %2 = vector.load %arg1[%c0_1, %c0_2] : memref<8x128xf32, #tpu.memory_space<vmem>>, vector<8x128xf32>
    tpu.vector_store %arg1[%c0_1, %c0_2], %1 {strides = array<i32>} : memref<8x128xf32, #tpu.memory_space<vmem>>, vector<8x128xf32>,
    return
  }
}

</mosaic_0001>

<llo_original>
// kernel: tpu_custom_call.1
$region0: #{tpu_custom_call.1}
  #allocation0 [shape = 'u32[]', space=smem, size = 0x4, offset = 0x4, fixed_abs, tag = 'smem constant byte address 0x4 - core index']
  #allocation1 [shape = 'u32[144,128]{1,0:T(1,128)}', space=vmem, size = 0x12000, scoped, tag = 'internal scratch']
  %s0 = inlined_call_operand.hbm [shape: f32[8,128], index: 0, kind: input, shape index: {}]
  %s1 = inlined_call_operand.hbm [shape: f32[8,128], index: 1, kind: output, shape index: {}]
  %s2 = sld [smem:[#allocation0]]
  $region18: #{tpu_custom_call.1} parent=0
    _
  %s4 = ssub.s32 1, %s2
  %s5 = scalar_select 0, %s4, %s2
  $region1: #{tpu_custom_call.1} parent=0
    #allocation2 [shape = 'u8[4096]{0}', space=vmem, size = 0x1000, scoped, tag = 'input window, operand 0, single buffered']
    #allocation3 [shape = 's32[1]{0}', space=sflag, size = 0x4, scoped, tag = 'scoped memory for tpu_custom_call.1']
    #allocation4 [shape = 's32[1]{0}', space=sflag, size = 0x4, scoped, tag = 'scoped memory for tpu_custom_call.1']
    #allocation5 [shape = 'u8[4096]{0}', space=vmem, size = 0x1000, scoped, tag = 'output window, operand 0, single buffered']
    %6 = vsyncpa [#allocation3], 0
    %7 = vsyncpa [#allocation4], 0
    // Predicated region
    $region2: #{tpu_custom_call.1} parent=1 // pred_check
      _
    $region3: #{tpu_custom_call.1} parent=1 // pred_check_branch
      %9 = sbr.rel (0) target = $region5
    $region4: #{tpu_custom_call.1} parent=1 // pred_region
      %s11 = ssub.s32 128, 128
      %12 = vsyncadd [#allocation3], %s11
      %s14 = sshll.u32 [#allocation2], 4
      %s15 = int_to_ptr.vmem [resolvable:$true] %s14
      %17 = dma.hbm_to_vmem [thread:$0]  %s0, 128, %s15, [#allocation3]
    $region5: #{tpu_custom_call.1} parent=1 // pred_fallthru
      _
    // Predicated region
    $region6: #{tpu_custom_call.1} parent=1 // pred_check
      _
    $region7: #{tpu_custom_call.1} parent=1 // pred_check_branch
      %19 = sbr.rel (0) target = $region9
    $region8: #{tpu_custom_call.1} parent=1 // pred_region
      %20 = dma.done [#allocation3], 128
    $region9: #{tpu_custom_call.1} parent=1 // pred_fallthru
      _
    %v21 = vld [vmem:[#allocation2] sm:$0xff]
    %22 = vrot.lane.b32.xlu0 %v21, 1
    %v23 = vpop.permute.xlu0 %22
    %24 = vst [vmem:[#allocation5] sm:$0xff] %v23
    // Predicated region
    $region10: #{tpu_custom_call.1} parent=1 // pred_check
      _
    $region11: #{tpu_custom_call.1} parent=1 // pred_check_branch
      %26 = sbr.rel (0) target = $region13
    $region12: #{tpu_custom_call.1} parent=1 // pred_region
      %s28 = ssub.s32 128, 128
      %29 = vsyncadd [#allocation4], %s28
      %s31 = sshll.u32 [#allocation5], 4
      %s32 = int_to_ptr.vmem [resolvable:$true] %s31
      %34 = dma.vmem_to_hbm [thread:$0]  %s32, 128, %s1, [#allocation4]
    $region13: #{tpu_custom_call.1} parent=1 // pred_fallthru
      _
    // Predicated region
    $region14: #{tpu_custom_call.1} parent=1 // pred_check
      _
    $region15: #{tpu_custom_call.1} parent=1 // pred_check_branch
      %36 = sbr.rel (0) target = $region17
    $region16: #{tpu_custom_call.1} parent=1 // pred_region
      %37 = dma.done [#allocation4], 128
    $region17: #{tpu_custom_call.1} parent=1 // pred_fallthru
      _
    %38 = vsyncpa [#allocation3], 1
    %39 = vsyncpa [#allocation4], 1

</llo_original>
